<compile_context>
chip_gen: v5e
topology: v5e:2x2
jax: 0.10.0
libtpu: 0.0.40
codegen_flags: <defaults>
</compile_context>

<pallas_src>
import jax
import jax.numpy as jnp
from jax.experimental import pallas as pl
from jax.experimental.pallas import tpu as pltpu

HIDDEN = 512
ENSEMBLE = 10
BN_EPS = 1e-5


def _round_up(n, m):
    return ((n + m - 1) // m) * m


def neuralnet_kernel(xT_ref, w_ref, b_ref, o_ref):
    # x tile arrives feature-major (D, TB); output row is lane-dense (1, TB).
    o_ref[...] = jnp.dot(w_ref[...], xT_ref[...],
                         preferred_element_type=jnp.float32) + b_ref[...]


def prepare_params(p):
    """Collapse the fully-linear eval-mode network into (w_eff, b_eff), in f32."""
    # --- BatchNorm (running stats) folded into the input Linear ---
    scale = p["gamma"] * jax.lax.rsqrt(p["var"] + BN_EPS)            # (H,)
    win_f = p["win"] * scale[:, None]                                # (H, D)
    bin_f = (p["bin"] - p["mean"]) * scale + p["beta"]               # (H,)

    # --- collapse each ensemble head: W4@W3@W2@W1 and its propagated bias ---
    w43 = jnp.einsum("eij,ejk->eik", p["w4"], p["w3"])               # (E, 1, 128)
    w432 = jnp.einsum("eij,ejk->eik", w43, p["w2"])                  # (E, 1, 256)
    w4321 = jnp.einsum("eij,ejk->eik", w432, p["w1"])                # (E, 1, H)
    c_e = (jnp.einsum("eij,ej->ei", w432, p["b1"])
           + jnp.einsum("eij,ej->ei", w43, p["b2"])
           + jnp.einsum("eij,ej->ei", p["w4"], p["b3"])
           + p["b4"])                                                # (E, 1)

    # --- output Linear(10 -> 1) = weighted sum over the ensemble heads ---
    wout_v = p["wout"][0]                                            # (E,)
    v = jnp.einsum("e,eoh->h", wout_v, w4321)                        # (H,)
    c = jnp.dot(wout_v, c_e[:, 0]) + p["bout"][0]                    # scalar

    # --- fold the (BN-folded) input Linear last ---
    w_eff = (v @ win_f).reshape(1, -1)                               # (1, D)
    b_eff = (jnp.dot(v, bin_f) + c).reshape(1, 1)                    # (1, 1)
    return {"w_eff": w_eff.astype(jnp.float32),
            "b_eff": b_eff.astype(jnp.float32)}


def _choose_tile(B, tb):
    """Lane-dense (multiple of 128) batch tile; >= 2 grid steps when possible."""
    b128 = _round_up(max(B, 1), 128)
    if b128 <= 128:
        return 128                       # small-batch fallback: full 128-lane tile
    half = _round_up((b128 + 1) // 2, 128)   # split so the grid has >= 2 steps
    return max(128, min(tb, half))


def neuralnet_forward(x, prep, *, tb=512):
    """x: (B, input_dim) float32 -> (B,) float32 (eval-mode forward)."""
    assert tb % 128 == 0
    B, D = x.shape
    TB = _choose_tile(B, tb)
    B_pad = _round_up(B, TB)
    G = B_pad // TB

    xT = jnp.pad(x, ((0, B_pad - B), (0, 0))).T                      # (D, B_pad)

    out = pl.pallas_call(
        neuralnet_kernel,
        out_shape=jax.ShapeDtypeStruct((1, B_pad), jnp.float32),
        grid=(G,),
        in_specs=[
            pl.BlockSpec((D, TB), lambda i: (0, i)),     # streamed activations
            pl.BlockSpec((1, D), lambda i: (0, 0)),      # collapsed weight row
            pl.BlockSpec((1, 1), lambda i: (0, 0)),      # collapsed bias
        ],
        out_specs=pl.BlockSpec((1, TB), lambda i: (0, i)),
        compiler_params=pltpu.CompilerParams(
            dimension_semantics=("parallel",),           # shards across v7x's 2 TCs
        ),
    )(xT, prep["w_eff"], prep["b_eff"])
    return out[0, :B]


def init_params(key, input_dim):
    """Parameters in PyTorch layout: Linear weight = (out, in), stacked over ensemble."""
    ks = jax.random.split(key, 12)
    s = 0.05
    E, H = ENSEMBLE, HIDDEN
    return {
        "win": s * jax.random.normal(ks[0], (H, input_dim), jnp.float32),
        "bin": s * jax.random.normal(ks[1], (H,), jnp.float32),
        # BatchNorm1d(512) params / running stats (fresh init)
        "gamma": jnp.ones((H,), jnp.float32),
        "beta": jnp.zeros((H,), jnp.float32),
        "mean": jnp.zeros((H,), jnp.float32),
        "var": jnp.ones((H,), jnp.float32),
        "w1": s * jax.random.normal(ks[2], (E, H // 2, H), jnp.float32),
        "b1": s * jax.random.normal(ks[3], (E, H // 2), jnp.float32),
        "w2": s * jax.random.normal(ks[4], (E, H // 4, H // 2), jnp.float32),
        "b2": s * jax.random.normal(ks[5], (E, H // 4), jnp.float32),
        "w3": s * jax.random.normal(ks[6], (E, H // 8, H // 4), jnp.float32),
        "b3": s * jax.random.normal(ks[7], (E, H // 8), jnp.float32),
        "w4": s * jax.random.normal(ks[8], (E, 1, H // 8), jnp.float32),
        "b4": s * jax.random.normal(ks[9], (E, 1), jnp.float32),
        "wout": s * jax.random.normal(ks[10], (1, E), jnp.float32),
        "bout": s * jax.random.normal(ks[11], (1,), jnp.float32),
    }


def reference_forward(x, p):
    """Pure-JAX eval-mode reference matching the PyTorch module, layer by layer."""
    scale = p["gamma"] / jnp.sqrt(p["var"] + BN_EPS)
    h = x @ p["win"].T + p["bin"]
    h = (h - p["mean"]) * scale + p["beta"]          # eval BatchNorm; Dropout = id
    outs = []
    for i in range(ENSEMBLE):
        a = h @ p["w1"][i].T + p["b1"][i]
        a = a @ p["w2"][i].T + p["b2"][i]
        a = a @ p["w3"][i].T + p["b3"][i]
        a = a @ p["w4"][i].T + p["b4"][i]            # (B, 1)
        outs.append(a)
    cat = jnp.concatenate(outs, axis=1)              # (B, 10)
    return (cat @ p["wout"].T + p["bout"])[:, 0]     # (B,)


if __name__ == "__main__":
    B, INPUT_DIM = 8, 32
    key = jax.random.PRNGKey(0)
    kx, kp = jax.random.split(key)
    x = jax.random.normal(kx, (B, INPUT_DIM), dtype=jnp.float32)
    params = init_params(kp, INPUT_DIM)
    prep = prepare_params(params)

    # small-batch path (single grid step, 128-lane tile)
    y = neuralnet_forward(x, prep)
    jax.block_until_ready(y)
    assert y.shape == (B,) and y.dtype == jnp.float32
    y_ref = reference_forward(x, params)
    assert jnp.allclose(y, y_ref, atol=1e-3, rtol=1e-2), (y, y_ref)

    # multi-tile path (exercises padding + a >=2-step parallel grid)
    B2 = 300
    x2 = jax.random.normal(jax.random.PRNGKey(1), (B2, INPUT_DIM), jnp.float32)
    y2 = neuralnet_forward(x2, prep)
    jax.block_until_ready(y2)
    assert y2.shape == (B2,)
    y2_ref = reference_forward(x2, params)
    assert jnp.allclose(y2, y2_ref, atol=1e-3, rtol=1e-2), (y2, y2_ref)

    print("KERNEL_OK")
</pallas_src>

<mosaic_0001>
module attributes {stable_mosaic.version = 11 : i64} {
  func.func @neuralnet_kernel(%arg0: i32, %arg1: memref<32x128xf32, #tpu.memory_space<vmem>>, %arg2: memref<1x32xf32, #tpu.memory_space<vmem>>, %arg3: memref<1x1xf32, #tpu.memory_space<vmem>>, %arg4: memref<1x128xf32, #tpu.memory_space<vmem>>) attributes {dimension_semantics = [#tpu.dimension_semantics<parallel>], iteration_bounds = array<i64: 1>, scalar_prefetch = 0 : i64, scratch_operands = 0 : i64, tpu.core_type = #tpu.core_type<tc>, window_params = [{transform_indices = @transform_0, window_bounds = array<i64: 32, 128>}, {pipeline_mode = #tpu.pipeline_mode<synchronous>, transform_indices = @transform_1, window_bounds = array<i64: 1, 32>}, {pipeline_mode = #tpu.pipeline_mode<synchronous>, transform_indices = @transform_2, window_bounds = array<i64: 1, 1>}, {transform_indices = @transform_3, window_bounds = array<i64: 1, 128>}]} {
    %c0 = arith.constant 0 : index
    %c0_0 = arith.constant 0 : index
    %0 = vector.load %arg2[%c0, %c0_0] : memref<1x32xf32, #tpu.memory_space<vmem>>, vector<1x32xf32>
    %c0_1 = arith.constant 0 : index
    %c0_2 = arith.constant 0 : index
    %1 = vector.load %arg1[%c0_1, %c0_2] : memref<32x128xf32, #tpu.memory_space<vmem>>, vector<32x128xf32>
    %cst = arith.constant dense<0.000000e+00> : vector<1x128xf32>
    %2 = tpu.matmul %0, %1, %cst {dimension_numbers = #tpu.dot_dimension_numbers<[1], [0], [0], [1], [0, 0, 1, 1], [], []>} : vector<1x32xf32>, vector<32x128xf32>, vector<1x128xf32> -> vector<1x128xf32>
    %c0_3 = arith.constant 0 : index
    %c0_4 = arith.constant 0 : index
    %3 = vector.load %arg3[%c0_3, %c0_4] : memref<1x1xf32, #tpu.memory_space<vmem>>, vector<1x1xf32>
    %4 = vector.broadcast %3 : vector<1x1xf32> to vector<1x128xf32>
    %5 = arith.addf %2, %4 : vector<1x128xf32>
    %c0_5 = arith.constant 0 : index
    %c0_6 = arith.constant 0 : index
    %6 = vector.load %arg4[%c0_5, %c0_6] : memref<1x128xf32, #tpu.memory_space<vmem>>, vector<1x128xf32>
    tpu.vector_store %arg4[%c0_5, %c0_6], %5 {strides = array<i32>} : memref<1x128xf32, #tpu.memory_space<vmem>>, vector<1x128xf32>,
    return
  }
  func.func @transform_0(%arg0: i32) -> (i32, i32) {
    %c0_i32 = arith.constant 0 : i32
    %c0_i32_0 = arith.constant 0 : i32
    return %c0_i32, %arg0 : i32, i32
  }
  func.func @transform_1(%arg0: i32) -> (i32, i32) {
    %c0_i32 = arith.constant 0 : i32
    %c0_i32_0 = arith.constant 0 : i32
    %c0_i32_1 = arith.constant 0 : i32
    return %c0_i32, %c0_i32_0 : i32, i32
  }
  func.func @transform_2(%arg0: i32) -> (i32, i32) {
    %c0_i32 = arith.constant 0 : i32
    %c0_i32_0 = arith.constant 0 : i32
    %c0_i32_1 = arith.constant 0 : i32
    return %c0_i32, %c0_i32_0 : i32, i32
  }
  func.func @transform_3(%arg0: i32) -> (i32, i32) {
    %c0_i32 = arith.constant 0 : i32
    %c0_i32_0 = arith.constant 0 : i32
    return %c0_i32, %arg0 : i32, i32
  }
}

</mosaic_0001>

<llo_original>
// kernel: tpu_custom_call.1
$region0: #{tpu_custom_call.1}
  #allocation0 [shape = 'u32[]', space=smem, size = 0x4, offset = 0x4, fixed_abs, tag = 'smem constant byte address 0x4 - core index']
  #allocation1 [shape = 'u32[72,128]{1,0:T(1,128)}', space=vmem, size = 0x9000, scoped, tag = 'internal scratch']
  #allocation2 [shape = 'f32[1,1]{1,0:T(1,128)S(1)}', space=vmem, size = 0x200, scoped, tag = 'scoped memory for tpu_custom_call.1']
  %s0 = inlined_call_operand.hbm [shape: f32[32,128], index: 0, kind: input, shape index: {}]
  %s1 = inlined_call_operand.vmem [shape: f32[1,32], index: 1, kind: input, shape index: {}]
  %s2 = inlined_call_operand.<no memory space> [shape: f32[1,1], index: 2, kind: input, shape index: {}]
  %s3 = inlined_call_operand.hbm [shape: f32[1,128], index: 3, kind: output, shape index: {}]
  %s4 = sld [smem:[#allocation0]]
  $region26: #{tpu_custom_call.1} parent=0
    _
  %s6 = ssub.s32 1, %s4
  %s7 = scalar_select 0, %s6, %s4
  %v8 = vstv %s2
  %9 = vst [vmem:[#allocation2] sm:$0x1] %v8
  $region1: #{tpu_custom_call.1} parent=0
    #allocation3 [shape = 'u8[16384]{0}', space=vmem, size = 0x4000, scoped, tag = 'input window, operand 0, single buffered']
    #allocation4 [shape = 's32[1]{0}', space=sflag, size = 0x4, scoped, tag = 'scoped memory for tpu_custom_call.1']
    #allocation5 [shape = 's32[1]{0}', space=sflag, size = 0x4, scoped, tag = 'scoped memory for tpu_custom_call.1']
    #allocation6 [shape = 'u8[512]{0}', space=vmem, size = 0x400, scoped, tag = 'output window, operand 0, single buffered']
    %10 = vsyncpa [#allocation4], 0
    %11 = vsyncpa [#allocation5], 0
    // Predicated region
    $region2: #{tpu_custom_call.1} parent=1 // pred_check
      _
    $region3: #{tpu_custom_call.1} parent=1 // pred_check_branch
      %13 = sbr.rel (0) target = $region5
    $region4: #{tpu_custom_call.1} parent=1 // pred_region
      %15 = vsyncadd [#allocation4], 0
      %s16 = sshll.u32 %s0, 4
      %s17 = int_to_ptr.hbm [resolvable:$true] %s16
      %s18 = sshll.u32 [#allocation3], 4
      %s19 = int_to_ptr.vmem [resolvable:$true] %s18
      %24 = dma.hbm_to_vmem [thread:$0]  %s17, 512, %s19, [#allocation4], 128, 128, 8
    $region5: #{tpu_custom_call.1} parent=1 // pred_fallthru
      _
    // Predicated region
    $region6: #{tpu_custom_call.1} parent=1 // pred_check
      _
    $region7: #{tpu_custom_call.1} parent=1 // pred_check_branch
      %26 = sbr.rel (0) target = $region9
    $region8: #{tpu_custom_call.1} parent=1 // pred_region
      _
    $region9: #{tpu_custom_call.1} parent=1 // pred_fallthru
      _
    // Predicated region
    $region10: #{tpu_custom_call.1} parent=1 // pred_check
      _
    $region11: #{tpu_custom_call.1} parent=1 // pred_check_branch
      %28 = sbr.rel (0) target = $region13
    $region12: #{tpu_custom_call.1} parent=1 // pred_region
      _
    $region13: #{tpu_custom_call.1} parent=1 // pred_fallthru
      _
    // Predicated region
    $region14: #{tpu_custom_call.1} parent=1 // pred_check
      _
    $region15: #{tpu_custom_call.1} parent=1 // pred_check_branch
      %30 = sbr.rel (0) target = $region17
    $region16: #{tpu_custom_call.1} parent=1 // pred_region
      %32 = dma.done [#allocation4], 512
    $region17: #{tpu_custom_call.1} parent=1 // pred_fallthru
      _
    %v33 = vld [vmem:[%s1] sm:$0x1]
    %v34 = vld [vmem:[#allocation3] sm:$0xff]
    %v35 = vld [vmem:[#allocation3 + $0x8] sm:$0xff]
    %v36 = vld [vmem:[#allocation3 + $0x10] sm:$0xff]
    %v37 = vld [vmem:[#allocation3 + $0x18] sm:$0xff]
    %v38 = vld [vmem:[#allocation2] sm:$0x1]
    %40 = vset.pattern.permute.xlu0 0
    %41 = vperm.xlu0 %40, %v38
    %v42 = vpop.permute.xlu0 %41
    %v44 = vperm.slane %v42, 0
    %vm45 = vcmask 261120
    %v47 = vsel %vm45, %v33, 0
    %49 = vmatpush.msra.mxu0 0.0
    %50 = vmatpush.msra.mxu0 0.0
    %51 = vmatpush.msra.mxu0 0.0
    %52 = vmatpush.msra.mxu0 0.0
    %53 = vmatpush.msra.mxu0 0.0
    %54 = vmatpush.msra.mxu0 0.0
    %55 = vmatpush.msra.mxu0 0.0
    %56 = vmatpush.msra.mxu0 0.0
    %57 = vmatpush.msra.mxu0 0.0
    %58 = vmatpush.msra.mxu0 0.0
    %59 = vmatpush.msra.mxu0 0.0
    %60 = vmatpush.msra.mxu0 0.0
    %61 = vmatpush.msra.mxu0 %v37
    %62 = vmatpush.msra.mxu0 %v36
    %63 = vmatpush.msra.mxu0 %v35
    %64 = vmatpush.msra.mxu0 %v34
    %65 = vmatmul.f32.gmra.mxu0 %v47
    %v66 = vpop.f32.mrf.mxu0
    %v67 = vadd.f32 %v44, %v66
    %68 = vdwg.mxu0
    %69 = vst [vmem:[#allocation6] sm:$0x1] %v67
    // Predicated region
    $region18: #{tpu_custom_call.1} parent=1 // pred_check
      _
    $region19: #{tpu_custom_call.1} parent=1 // pred_check_branch
      %71 = sbr.rel (0) target = $region21
    $region20: #{tpu_custom_call.1} parent=1 // pred_region
      %73 = vsyncadd [#allocation5], 0
      %s75 = sshll.u32 [#allocation6], 4
      %s76 = int_to_ptr.vmem [resolvable:$true] %s75
      %s77 = sshll.u32 %s3, 4
      %s78 = int_to_ptr.hbm [resolvable:$true] %s77
      %80 = dma.vmem_to_hbm [thread:$0]  %s76, 16, %s78, [#allocation5]
    $region21: #{tpu_custom_call.1} parent=1 // pred_fallthru
      _
    // Predicated region
    $region22: #{tpu_custom_call.1} parent=1 // pred_check
      _
    $region23: #{tpu_custom_call.1} parent=1 // pred_check_branch
      %82 = sbr.rel (0) target = $region25
    $region24: #{tpu_custom_call.1} parent=1 // pred_region
      %84 = dma.done [#allocation5], 16
    $region25: #{tpu_custom_call.1} parent=1 // pred_fallthru
      _
    %85 = vsyncpa [#allocation4], 1
    %86 = vsyncpa [#allocation5], 1

</llo_original>
